<compile_context>
chip_gen: v6e
topology: v6e:2x2x1
jax: 0.10.0
libtpu: 0.0.40
codegen_flags: <defaults>
</compile_context>

<pallas_src>
import functools

import jax
import jax.numpy as jnp
import numpy as np
from jax.experimental import pallas as pl
from jax.experimental.pallas import tpu as pltpu


# ------------------------------- the kernel --------------------------------

def encoder2_kernel(x_ref, w1, b1, w2, b2, w3, b3, o_ref, *, T):
    """x_ref: (80, N) with N = G*T (G whole batches folded into the lane axis).

    w_i: (Cout, 5*Cin) im2col weights, b_i: (Cout, 1).
    """
    x = x_ref[...].astype(jnp.float32)                       # (80, N)
    N = x.shape[1]

    # Per-tap lane-validity masks, computed once and reused by all 3 layers.
    # Position t (0..N-1) belongs to batch segment t // T; tap s = k - 2 reads
    # x[:, t + s], valid only if 0 <= (t % T) + s < T (zero padding otherwise).
    tmod = jax.lax.broadcasted_iota(jnp.int32, (1, N), 1) % T
    masks = []
    for k in range(5):
        s = k - 2
        if s == 0:
            masks.append(None)
        elif s > 0:
            masks.append(tmod < (T - s))
        else:
            masks.append(tmod >= (-s))

    def im2col(h):
        # rows [k*Cin + ci, t] = h[ci, t + k - 2]  (0 outside each batch segment)
        cols = []
        for k in range(5):
            s = k - 2
            r = h if s == 0 else pltpu.roll(h, shift=(-s) % N, axis=1)
            if masks[k] is not None:
                r = jnp.where(masks[k], r, 0.0)
            cols.append(r)
        return jnp.concatenate(cols, axis=0)                 # (5*Cin, N)

    def conv5(h, w_ref, b_ref):
        # single MXU matmul per layer: (Cout, 5*Cin) @ (5*Cin, N)
        return jnp.dot(w_ref[...], im2col(h),
                       preferred_element_type=jnp.float32) + b_ref[...]

    h = jnp.maximum(conv5(x, w1, b1), 0.0)                   # (32, N)
    h = jnp.maximum(conv5(h, w2, b2), 0.0)                   # (16, N)
    h = jnp.maximum(conv5(h, w3, b3), 0.0)                   # (3,  N)

    o_ref[...] = h.astype(o_ref.dtype)


# -------------------------------- wrapper -----------------------------------

def encoder2_forward(original, params, *, target_lanes=512):
    B, C, T = original.shape
    assert C == 80, "Encoder_2 expects 80 input channels (mel bins)"
    assert T % 128 == 0, "T must be a multiple of 128 for lane alignment"

    # Fold batch into the lane axis: (B, 80, T) -> (80, B*T).
    xf = jnp.transpose(original, (1, 0, 2)).reshape(C, B * T)

    # Batches per grid step: largest divisor of B with G*T <= target_lanes
    # (fat, lane-dense steps; grid stays "parallel" for megacore/v7x when >1).
    G = 1
    for d in range(1, B + 1):
        if B % d == 0 and d * T <= max(target_lanes, T):
            G = d
    num_groups = B // G
    N = G * T

    # im2col weight layout: (Cout, Cin, K) -> (Cout, K, Cin) -> (Cout, K*Cin),
    # matching the [k-major, ci-minor] row order produced by im2col().
    flat = []
    for w, b in params["enc"]:
        Cout, Cin, K = w.shape
        wf = jnp.transpose(w, (0, 2, 1)).reshape(Cout, K * Cin)
        flat += [wf, b.reshape(Cout, 1)]

    in_specs = [pl.BlockSpec((C, N), lambda g: (0, g))]
    in_specs += [pl.BlockSpec(a.shape, lambda g: (0, 0)) for a in flat]

    out_folded = pl.pallas_call(
        functools.partial(encoder2_kernel, T=T),
        out_shape=jax.ShapeDtypeStruct((3, B * T), original.dtype),
        grid_spec=pltpu.PrefetchScalarGridSpec(
            num_scalar_prefetch=0,
            grid=(num_groups,),
            in_specs=in_specs,
            out_specs=pl.BlockSpec((3, N), lambda g: (0, g)),
        ),
        compiler_params=pltpu.CompilerParams(
            dimension_semantics=("parallel",)),
    )(xf, *flat)

    # Unfold: (3, B*T) -> (3, B, T) -> (B, 3, T)
    return jnp.transpose(out_folded.reshape(3, B, T), (1, 0, 2))


# -------------------------- parameter construction --------------------------

def init_params(key):
    """Deterministic, PyTorch-Conv1d-style uniform(-1/sqrt(fan_in), ...) init."""
    def conv_init(k, cout, cin, ksize):
        kw, kb = jax.random.split(k)
        bound = 1.0 / np.sqrt(cin * ksize)
        w = jax.random.uniform(kw, (cout, cin, ksize), jnp.float32, -bound, bound)
        b = jax.random.uniform(kb, (cout,), jnp.float32, -bound, bound)
        return w, b

    keys = jax.random.split(key, 3)
    enc = [conv_init(keys[0], 32, 80, 5),
           conv_init(keys[1], 16, 32, 5),
           conv_init(keys[2], 3, 16, 5)]
    return {"enc": enc}


# ------------------------------ pure-JAX reference ---------------------------

def _conv1d_ref(x, w, b, pad):
    out = jax.lax.conv_general_dilated(
        x, w, window_strides=(1,), padding=[(pad, pad)],
        dimension_numbers=("NCH", "OIH", "NCH"))
    return out + b[None, :, None]


def encoder2_ref(x, params):
    h = x
    for w, b in params["enc"]:
        h = jax.nn.relu(_conv1d_ref(h, w, b, 2))
    return h


# ----------------------------------- main ------------------------------------

if __name__ == "__main__":
    key = jax.random.PRNGKey(0)
    kx, kp = jax.random.split(key, 2)

    B, C, T = 2, 80, 128
    original = jax.random.normal(kx, (B, C, T), jnp.float32)
    params = init_params(kp)

    out = encoder2_forward(original, params)
    out = jax.block_until_ready(out)

    ref = encoder2_ref(original, params)
    assert out.shape == (B, 3, T)
    np.testing.assert_allclose(np.asarray(out), np.asarray(ref),
                               rtol=1e-4, atol=1e-4)
    print("KERNEL_OK")
</pallas_src>

<mosaic_0001>
module attributes {stable_mosaic.version = 11 : i64} {
  func.func @encoder2_kernel(%arg0: i32, %arg1: memref<80x256xf32, #tpu.memory_space<vmem>>, %arg2: memref<32x400xf32, #tpu.memory_space<vmem>>, %arg3: memref<32x1xf32, #tpu.memory_space<vmem>>, %arg4: memref<16x160xf32, #tpu.memory_space<vmem>>, %arg5: memref<16x1xf32, #tpu.memory_space<vmem>>, %arg6: memref<3x80xf32, #tpu.memory_space<vmem>>, %arg7: memref<3x1xf32, #tpu.memory_space<vmem>>, %arg8: memref<3x256xf32, #tpu.memory_space<vmem>>) attributes {dimension_semantics = [#tpu.dimension_semantics<parallel>], iteration_bounds = array<i64: 1>, scalar_prefetch = 0 : i64, scratch_operands = 0 : i64, tpu.core_type = #tpu.core_type<tc>, window_params = [{transform_indices = @transform_0, window_bounds = array<i64: 80, 256>}, {pipeline_mode = #tpu.pipeline_mode<synchronous>, transform_indices = @transform_1, window_bounds = array<i64: 32, 400>}, {pipeline_mode = #tpu.pipeline_mode<synchronous>, transform_indices = @transform_2, window_bounds = array<i64: 32, 1>}, {pipeline_mode = #tpu.pipeline_mode<synchronous>, transform_indices = @transform_3, window_bounds = array<i64: 16, 160>}, {pipeline_mode = #tpu.pipeline_mode<synchronous>, transform_indices = @transform_4, window_bounds = array<i64: 16, 1>}, {pipeline_mode = #tpu.pipeline_mode<synchronous>, transform_indices = @transform_5, window_bounds = array<i64: 3, 80>}, {pipeline_mode = #tpu.pipeline_mode<synchronous>, transform_indices = @transform_6, window_bounds = array<i64: 3, 1>}, {transform_indices = @transform_7, window_bounds = array<i64: 3, 256>}]} {
    %c0 = arith.constant 0 : index
    %c0_0 = arith.constant 0 : index
    %0 = vector.load %arg1[%c0, %c0_0] : memref<80x256xf32, #tpu.memory_space<vmem>>, vector<80x256xf32>
    %1 = tpu.iota {dimensions = array<i32: 1>} : vector<1x256xi32>
    %c128_i32 = arith.constant 128 : i32
    %c0_i32 = arith.constant 0 : i32
    %2 = arith.cmpi eq, %c128_i32, %c0_i32 : i32
    %c1_i32 = arith.constant 1 : i32
    %3 = arith.select %2, %c1_i32, %c128_i32 : i32
    %4 = vector.broadcast %3 : i32 to vector<1x256xi32>
    %5 = arith.remsi %1, %4 : vector<1x256xi32>
    %c0_i32_1 = arith.constant 0 : i32
    %6 = vector.broadcast %c0_i32_1 : i32 to vector<1x256xi32>
    %7 = arith.cmpi ne, %5, %6 : vector<1x256xi32>
    %c0_i32_2 = arith.constant 0 : i32
    %8 = vector.broadcast %c0_i32_2 : i32 to vector<1x256xi32>
    %9 = arith.cmpi slt, %5, %8 : vector<1x256xi32>
    %c0_i32_3 = arith.constant 0 : i32
    %10 = arith.cmpi slt, %3, %c0_i32_3 : i32
    %11 = vector.broadcast %10 : i1 to vector<1x256xi1>
    %12 = vector.broadcast %11 : vector<1x256xi1> to vector<1x256xi1>
    %13 = arith.xori %9, %12 : vector<1x256xi1>
    %14 = arith.andi %13, %7 : vector<1x256xi1>
    %15 = vector.broadcast %3 : i32 to vector<1x256xi32>
    %16 = arith.addi %5, %15 : vector<1x256xi32>
    %17 = arith.select %14, %16, %5 : vector<1x256xi1>, vector<1x256xi32>
    %c2_i32 = arith.constant 2 : i32
    %18 = vector.broadcast %c2_i32 : i32 to vector<1x256xi32>
    %19 = arith.cmpi sge, %17, %18 : vector<1x256xi32>
    %c1_i32_4 = arith.constant 1 : i32
    %20 = vector.broadcast %c1_i32_4 : i32 to vector<1x256xi32>
    %21 = arith.cmpi sge, %17, %20 : vector<1x256xi32>
    %c127_i32 = arith.constant 127 : i32
    %22 = vector.broadcast %c127_i32 : i32 to vector<1x256xi32>
    %23 = arith.cmpi slt, %17, %22 : vector<1x256xi32>
    %c126_i32 = arith.constant 126 : i32
    %24 = vector.broadcast %c126_i32 : i32 to vector<1x256xi32>
    %25 = arith.cmpi slt, %17, %24 : vector<1x256xi32>
    %c0_5 = arith.constant 0 : index
    %c0_6 = arith.constant 0 : index
    %26 = vector.load %arg2[%c0_5, %c0_6] : memref<32x400xf32, #tpu.memory_space<vmem>>, vector<32x400xf32>
    %c2_i32_7 = arith.constant 2 : i32
    %27 = tpu.dynamic_rotate %0 by %c2_i32_7 dim 1 : vector<80x256xf32>, i32 -> vector<80x256xf32>
    %cst = arith.constant 0.000000e+00 : f32
    %28 = vector.shape_cast %19 : vector<1x256xi1> to vector<1x256xi1>
    %29 = vector.broadcast %28 : vector<1x256xi1> to vector<80x256xi1>
    %30 = vector.broadcast %cst : f32 to vector<80x256xf32>
    %31 = arith.select %29, %27, %30 : vector<80x256xi1>, vector<80x256xf32>
    %c1_i32_8 = arith.constant 1 : i32
    %32 = tpu.dynamic_rotate %0 by %c1_i32_8 dim 1 : vector<80x256xf32>, i32 -> vector<80x256xf32>
    %cst_9 = arith.constant 0.000000e+00 : f32
    %33 = vector.shape_cast %21 : vector<1x256xi1> to vector<1x256xi1>
    %34 = vector.broadcast %33 : vector<1x256xi1> to vector<80x256xi1>
    %35 = vector.broadcast %cst_9 : f32 to vector<80x256xf32>
    %36 = arith.select %34, %32, %35 : vector<80x256xi1>, vector<80x256xf32>
    %c255_i32 = arith.constant 255 : i32
    %37 = tpu.dynamic_rotate %0 by %c255_i32 dim 1 : vector<80x256xf32>, i32 -> vector<80x256xf32>
    %cst_10 = arith.constant 0.000000e+00 : f32
    %38 = vector.shape_cast %23 : vector<1x256xi1> to vector<1x256xi1>
    %39 = vector.broadcast %38 : vector<1x256xi1> to vector<80x256xi1>
    %40 = vector.broadcast %cst_10 : f32 to vector<80x256xf32>
    %41 = arith.select %39, %37, %40 : vector<80x256xi1>, vector<80x256xf32>
    %c254_i32 = arith.constant 254 : i32
    %42 = tpu.dynamic_rotate %0 by %c254_i32 dim 1 : vector<80x256xf32>, i32 -> vector<80x256xf32>
    %cst_11 = arith.constant 0.000000e+00 : f32
    %43 = vector.shape_cast %25 : vector<1x256xi1> to vector<1x256xi1>
    %44 = vector.broadcast %43 : vector<1x256xi1> to vector<80x256xi1>
    %45 = vector.broadcast %cst_11 : f32 to vector<80x256xf32>
    %46 = arith.select %44, %42, %45 : vector<80x256xi1>, vector<80x256xf32>
    %47 = tpu.concatenate %31, %36, %0, %41, %46 in 0 : vector<80x256xf32>, vector<80x256xf32>, vector<80x256xf32>, vector<80x256xf32>, vector<80x256xf32> -> vector<400x256xf32>
    %cst_12 = arith.constant dense<0.000000e+00> : vector<32x256xf32>
    %48 = tpu.matmul %26, %47, %cst_12 {dimension_numbers = #tpu.dot_dimension_numbers<[1], [0], [0], [1], [0, 0, 1, 1], [], []>} : vector<32x400xf32>, vector<400x256xf32>, vector<32x256xf32> -> vector<32x256xf32>
    %c0_13 = arith.constant 0 : index
    %c0_14 = arith.constant 0 : index
    %49 = vector.load %arg3[%c0_13, %c0_14] : memref<32x1xf32, #tpu.memory_space<vmem>>, vector<32x1xf32>
    %50 = vector.broadcast %49 : vector<32x1xf32> to vector<32x256xf32>
    %51 = arith.addf %48, %50 : vector<32x256xf32>
    %cst_15 = arith.constant 0.000000e+00 : f32
    %52 = vector.broadcast %cst_15 : f32 to vector<32x256xf32>
    %53 = arith.maximumf %51, %52 : vector<32x256xf32>
    %c0_16 = arith.constant 0 : index
    %c0_17 = arith.constant 0 : index
    %54 = vector.load %arg4[%c0_16, %c0_17] : memref<16x160xf32, #tpu.memory_space<vmem>>, vector<16x160xf32>
    %c2_i32_18 = arith.constant 2 : i32
    %55 = tpu.dynamic_rotate %53 by %c2_i32_18 dim 1 : vector<32x256xf32>, i32 -> vector<32x256xf32>
    %cst_19 = arith.constant 0.000000e+00 : f32
    %56 = vector.shape_cast %19 : vector<1x256xi1> to vector<1x256xi1>
    %57 = vector.broadcast %56 : vector<1x256xi1> to vector<32x256xi1>
    %58 = vector.broadcast %cst_19 : f32 to vector<32x256xf32>
    %59 = arith.select %57, %55, %58 : vector<32x256xi1>, vector<32x256xf32>
    %c1_i32_20 = arith.constant 1 : i32
    %60 = tpu.dynamic_rotate %53 by %c1_i32_20 dim 1 : vector<32x256xf32>, i32 -> vector<32x256xf32>
    %cst_21 = arith.constant 0.000000e+00 : f32
    %61 = vector.shape_cast %21 : vector<1x256xi1> to vector<1x256xi1>
    %62 = vector.broadcast %61 : vector<1x256xi1> to vector<32x256xi1>
    %63 = vector.broadcast %cst_21 : f32 to vector<32x256xf32>
    %64 = arith.select %62, %60, %63 : vector<32x256xi1>, vector<32x256xf32>
    %c255_i32_22 = arith.constant 255 : i32
    %65 = tpu.dynamic_rotate %53 by %c255_i32_22 dim 1 : vector<32x256xf32>, i32 -> vector<32x256xf32>
    %cst_23 = arith.constant 0.000000e+00 : f32
    %66 = vector.shape_cast %23 : vector<1x256xi1> to vector<1x256xi1>
    %67 = vector.broadcast %66 : vector<1x256xi1> to vector<32x256xi1>
    %68 = vector.broadcast %cst_23 : f32 to vector<32x256xf32>
    %69 = arith.select %67, %65, %68 : vector<32x256xi1>, vector<32x256xf32>
    %c254_i32_24 = arith.constant 254 : i32
    %70 = tpu.dynamic_rotate %53 by %c254_i32_24 dim 1 : vector<32x256xf32>, i32 -> vector<32x256xf32>
    %cst_25 = arith.constant 0.000000e+00 : f32
    %71 = vector.shape_cast %25 : vector<1x256xi1> to vector<1x256xi1>
    %72 = vector.broadcast %71 : vector<1x256xi1> to vector<32x256xi1>
    %73 = vector.broadcast %cst_25 : f32 to vector<32x256xf32>
    %74 = arith.select %72, %70, %73 : vector<32x256xi1>, vector<32x256xf32>
    %75 = tpu.concatenate %59, %64, %53, %69, %74 in 0 : vector<32x256xf32>, vector<32x256xf32>, vector<32x256xf32>, vector<32x256xf32>, vector<32x256xf32> -> vector<160x256xf32>
    %cst_26 = arith.constant dense<0.000000e+00> : vector<16x256xf32>
    %76 = tpu.matmul %54, %75, %cst_26 {dimension_numbers = #tpu.dot_dimension_numbers<[1], [0], [0], [1], [0, 0, 1, 1], [], []>} : vector<16x160xf32>, vector<160x256xf32>, vector<16x256xf32> -> vector<16x256xf32>
    %c0_27 = arith.constant 0 : index
    %c0_28 = arith.constant 0 : index
    %77 = vector.load %arg5[%c0_27, %c0_28] : memref<16x1xf32, #tpu.memory_space<vmem>>, vector<16x1xf32>
    %78 = vector.broadcast %77 : vector<16x1xf32> to vector<16x256xf32>
    %79 = arith.addf %76, %78 : vector<16x256xf32>
    %cst_29 = arith.constant 0.000000e+00 : f32
    %80 = vector.broadcast %cst_29 : f32 to vector<16x256xf32>
    %81 = arith.maximumf %79, %80 : vector<16x256xf32>
    %c0_30 = arith.constant 0 : index
    %c0_31 = arith.constant 0 : index
    %82 = vector.load %arg6[%c0_30, %c0_31] : memref<3x80xf32, #tpu.memory_space<vmem>>, vector<3x80xf32>
    %c2_i32_32 = arith.constant 2 : i32
    %83 = tpu.dynamic_rotate %81 by %c2_i32_32 dim 1 : vector<16x256xf32>, i32 -> vector<16x256xf32>
    %cst_33 = arith.constant 0.000000e+00 : f32
    %84 = vector.shape_cast %19 : vector<1x256xi1> to vector<1x256xi1>
    %85 = vector.broadcast %84 : vector<1x256xi1> to vector<16x256xi1>
    %86 = vector.broadcast %cst_33 : f32 to vector<16x256xf32>
    %87 = arith.select %85, %83, %86 : vector<16x256xi1>, vector<16x256xf32>
    %c1_i32_34 = arith.constant 1 : i32
    %88 = tpu.dynamic_rotate %81 by %c1_i32_34 dim 1 : vector<16x256xf32>, i32 -> vector<16x256xf32>
    %cst_35 = arith.constant 0.000000e+00 : f32
    %89 = vector.shape_cast %21 : vector<1x256xi1> to vector<1x256xi1>
    %90 = vector.broadcast %89 : vector<1x256xi1> to vector<16x256xi1>
    %91 = vector.broadcast %cst_35 : f32 to vector<16x256xf32>
    %92 = arith.select %90, %88, %91 : vector<16x256xi1>, vector<16x256xf32>
    %c255_i32_36 = arith.constant 255 : i32
    %93 = tpu.dynamic_rotate %81 by %c255_i32_36 dim 1 : vector<16x256xf32>, i32 -> vector<16x256xf32>
    %cst_37 = arith.constant 0.000000e+00 : f32
    %94 = vector.shape_cast %23 : vector<1x256xi1> to vector<1x256xi1>
    %95 = vector.broadcast %94 : vector<1x256xi1> to vector<16x256xi1>
    %96 = vector.broadcast %cst_37 : f32 to vector<16x256xf32>
    %97 = arith.select %95, %93, %96 : vector<16x256xi1>, vector<16x256xf32>
    %c254_i32_38 = arith.constant 254 : i32
    %98 = tpu.dynamic_rotate %81 by %c254_i32_38 dim 1 : vector<16x256xf32>, i32 -> vector<16x256xf32>
    %cst_39 = arith.constant 0.000000e+00 : f32
    %99 = vector.shape_cast %25 : vector<1x256xi1> to vector<1x256xi1>
    %100 = vector.broadcast %99 : vector<1x256xi1> to vector<16x256xi1>
    %101 = vector.broadcast %cst_39 : f32 to vector<16x256xf32>
    %102 = arith.select %100, %98, %101 : vector<16x256xi1>, vector<16x256xf32>
    %103 = tpu.concatenate %87, %92, %81, %97, %102 in 0 : vector<16x256xf32>, vector<16x256xf32>, vector<16x256xf32>, vector<16x256xf32>, vector<16x256xf32> -> vector<80x256xf32>
    %cst_40 = arith.constant dense<0.000000e+00> : vector<3x256xf32>
    %104 = tpu.matmul %82, %103, %cst_40 {dimension_numbers = #tpu.dot_dimension_numbers<[1], [0], [0], [1], [0, 0, 1, 1], [], []>} : vector<3x80xf32>, vector<80x256xf32>, vector<3x256xf32> -> vector<3x256xf32>
    %c0_41 = arith.constant 0 : index
    %c0_42 = arith.constant 0 : index
    %105 = vector.load %arg7[%c0_41, %c0_42] : memref<3x1xf32, #tpu.memory_space<vmem>>, vector<3x1xf32>
    %106 = vector.broadcast %105 : vector<3x1xf32> to vector<3x256xf32>
    %107 = arith.addf %104, %106 : vector<3x256xf32>
    %cst_43 = arith.constant 0.000000e+00 : f32
    %108 = vector.broadcast %cst_43 : f32 to vector<3x256xf32>
    %109 = arith.maximumf %107, %108 : vector<3x256xf32>
    %c0_44 = arith.constant 0 : index
    %c0_45 = arith.constant 0 : index
    %110 = vector.load %arg8[%c0_44, %c0_45] : memref<3x256xf32, #tpu.memory_space<vmem>>, vector<3x256xf32>
    tpu.vector_store %arg8[%c0_44, %c0_45], %109 {strides = array<i32>} : memref<3x256xf32, #tpu.memory_space<vmem>>, vector<3x256xf32>,
    return
  }
  func.func @transform_0(%arg0: i32) -> (i32, i32) {
    %c0_i32 = arith.constant 0 : i32
    %c0_i32_0 = arith.constant 0 : i32
    return %c0_i32, %arg0 : i32, i32
  }
  func.func @transform_1(%arg0: i32) -> (i32, i32) {
    %c0_i32 = arith.constant 0 : i32
    %c0_i32_0 = arith.constant 0 : i32
    %c0_i32_1 = arith.constant 0 : i32
    return %c0_i32, %c0_i32_0 : i32, i32
  }
  func.func @transform_2(%arg0: i32) -> (i32, i32) {
    %c0_i32 = arith.constant 0 : i32
    %c0_i32_0 = arith.constant 0 : i32
    %c0_i32_1 = arith.constant 0 : i32
    return %c0_i32, %c0_i32_0 : i32, i32
  }
  func.func @transform_3(%arg0: i32) -> (i32, i32) {
    %c0_i32 = arith.constant 0 : i32
    %c0_i32_0 = arith.constant 0 : i32
    %c0_i32_1 = arith.constant 0 : i32
    return %c0_i32, %c0_i32_0 : i32, i32
  }
  func.func @transform_4(%arg0: i32) -> (i32, i32) {
    %c0_i32 = arith.constant 0 : i32
    %c0_i32_0 = arith.constant 0 : i32
    %c0_i32_1 = arith.constant 0 : i32
    return %c0_i32, %c0_i32_0 : i32, i32
  }
  func.func @transform_5(%arg0: i32) -> (i32, i32) {
    %c0_i32 = arith.constant 0 : i32
    %c0_i32_0 = arith.constant 0 : i32
    %c0_i32_1 = arith.constant 0 : i32
    return %c0_i32, %c0_i32_0 : i32, i32
  }
  func.func @transform_6(%arg0: i32) -> (i32, i32) {
    %c0_i32 = arith.constant 0 : i32
    %c0_i32_0 = arith.constant 0 : i32
    %c0_i32_1 = arith.constant 0 : i32
    return %c0_i32, %c0_i32_0 : i32, i32
  }
  func.func @transform_7(%arg0: i32) -> (i32, i32) {
    %c0_i32 = arith.constant 0 : i32
    %c0_i32_0 = arith.constant 0 : i32
    return %c0_i32, %arg0 : i32, i32
  }
}

</mosaic_0001>

<llo_original>
// kernel: tpu_custom_call.1
$region0: #{tpu_custom_call.1}
  #allocation0 [shape = 'u32[]', space=smem, size = 0x4, offset = 0x4, fixed_abs, tag = 'smem constant byte address 0x4 - core index']
  #allocation1 [shape = 'u32[144,128]{1,0:T(1,128)}', space=vmem, size = 0x12000, scoped, tag = 'internal scratch']
  %s0 = inlined_call_operand.hbm [shape: f32[80,256], index: 0, kind: input, shape index: {}]
  %s1 = inlined_call_operand.hbm [shape: f32[32,400], index: 1, kind: input, shape index: {}]
  %s2 = inlined_call_operand.vmem [shape: f32[32,1], index: 2, kind: input, shape index: {}]
  %s3 = inlined_call_operand.vmem [shape: f32[16,160], index: 3, kind: input, shape index: {}]
  %s4 = inlined_call_operand.vmem [shape: f32[16,1], index: 4, kind: input, shape index: {}]
  %s5 = inlined_call_operand.vmem [shape: f32[3,80], index: 5, kind: input, shape index: {}]
  %s6 = inlined_call_operand.vmem [shape: f32[3,1], index: 6, kind: input, shape index: {}]
  %s7 = inlined_call_operand.hbm [shape: f32[3,256], index: 7, kind: output, shape index: {}]
  %s8 = sld [smem:[#allocation0]]
  $region46: #{tpu_custom_call.1} parent=0
    _
  %s10 = ssub.s32 1, %s8
  %s11 = scalar_select 0, %s10, %s8
  $region1: #{tpu_custom_call.1} parent=0
    #allocation2 [shape = 'u8[81920]{0}', space=vmem, size = 0x14000, scoped, tag = 'input window, operand 0, single buffered']
    #allocation3 [shape = 's32[1]{0}', space=sflag, size = 0x4, scoped, tag = 'scoped memory for tpu_custom_call.1']
    #allocation4 [shape = 's32[1]{0}', space=sflag, size = 0x4, scoped, tag = 'scoped memory for tpu_custom_call.1']
    #allocation5 [shape = 'u8[65536]{0}', space=vmem, size = 0x10000, scoped, tag = 'input window, operand 1, single buffered']
    #allocation6 [shape = 's32[1]{0}', space=sflag, size = 0x4, scoped, tag = 'scoped memory for tpu_custom_call.1']
    #allocation7 [shape = 'u8[4096]{0}', space=vmem, size = 0x1000, scoped, tag = 'output window, operand 0, single buffered']
    %12 = vsyncpa [#allocation3], 0
    %13 = vsyncpa [#allocation6], 0
    %14 = vsyncpa [#allocation4], 0
    // Predicated region
    $region2: #{tpu_custom_call.1} parent=1 // pred_check
      _
    $region3: #{tpu_custom_call.1} parent=1 // pred_check_branch
      %16 = sbr.rel (0) target = $region5
    $region4: #{tpu_custom_call.1} parent=1 // pred_region
      %s18 = ssub.s32 2560, 2560
      %19 = vsyncadd [#allocation3], %s18
      %s20 = sshll.u32 [#allocation2], 4
      %s21 = int_to_ptr.vmem [resolvable:$true] %s20
      %26 = dma.hbm_to_vmem [thread:$0]  %s0, 2560, %s21, [#allocation3], 256, 256, 16
    $region5: #{tpu_custom_call.1} parent=1 // pred_fallthru
      _
    // Predicated region
    $region6: #{tpu_custom_call.1} parent=1 // pred_check
      _
    $region7: #{tpu_custom_call.1} parent=1 // pred_check_branch
      %28 = sbr.rel (0) target = $region9
    $region8: #{tpu_custom_call.1} parent=1 // pred_region
      %s30 = ssub.s32 2048, 2048
      %31 = vsyncadd [#allocation6], %s30
      %s32 = sshll.u32 [#allocation5], 4
      %s33 = int_to_ptr.vmem [resolvable:$true] %s32
      %38 = dma.hbm_to_vmem [thread:$0]  %s1, 2048, %s33, [#allocation6], 512, 512, 32
    $region9: #{tpu_custom_call.1} parent=1 // pred_fallthru
      _
    // Predicated region
    $region10: #{tpu_custom_call.1} parent=1 // pred_check
      _
    $region11: #{tpu_custom_call.1} parent=1 // pred_check_branch
      %40 = sbr.rel (0) target = $region13
    $region12: #{tpu_custom_call.1} parent=1 // pred_region
      _
    $region13: #{tpu_custom_call.1} parent=1 // pred_fallthru
      _
    // Predicated region
    $region14: #{tpu_custom_call.1} parent=1 // pred_check
      _
    $region15: #{tpu_custom_call.1} parent=1 // pred_check_branch
      %42 = sbr.rel (0) target = $region17
    $region16: #{tpu_custom_call.1} parent=1 // pred_region
      _
    $region17: #{tpu_custom_call.1} parent=1 // pred_fallthru
      _
    // Predicated region
    $region18: #{tpu_custom_call.1} parent=1 // pred_check
      _
    $region19: #{tpu_custom_call.1} parent=1 // pred_check_branch
      %44 = sbr.rel (0) target = $region21
    $region20: #{tpu_custom_call.1} parent=1 // pred_region
      _
    $region21: #{tpu_custom_call.1} parent=1 // pred_fallthru
      _
    // Predicated region
    $region22: #{tpu_custom_call.1} parent=1 // pred_check
      _
    $region23: #{tpu_custom_call.1} parent=1 // pred_check_branch
      %46 = sbr.rel (0) target = $region25
    $region24: #{tpu_custom_call.1} parent=1 // pred_region
      _
    $region25: #{tpu_custom_call.1} parent=1 // pred_fallthru
      _
    // Predicated region
    $region26: #{tpu_custom_call.1} parent=1 // pred_check
      _
    $region27: #{tpu_custom_call.1} parent=1 // pred_check_branch
      %48 = sbr.rel (0) target = $region29
    $region28: #{tpu_custom_call.1} parent=1 // pred_region
      _
    $region29: #{tpu_custom_call.1} parent=1 // pred_fallthru
      _
    // Predicated region
    $region30: #{tpu_custom_call.1} parent=1 // pred_check
      _
    $region31: #{tpu_custom_call.1} parent=1 // pred_check_branch
      %50 = sbr.rel (0) target = $region33
    $region32: #{tpu_custom_call.1} parent=1 // pred_region
      %51 = dma.done [#allocation3], 2560
    $region33: #{tpu_custom_call.1} parent=1 // pred_fallthru
      _
    // Predicated region
    $region34: #{tpu_custom_call.1} parent=1 // pred_check
      _
    $region35: #{tpu_custom_call.1} parent=1 // pred_check_branch
      %53 = sbr.rel (0) target = $region37
    $region36: #{tpu_custom_call.1} parent=1 // pred_region
      %54 = dma.done [#allocation6], 2048
    $region37: #{tpu_custom_call.1} parent=1 // pred_fallthru
      _
    %v55 = vld [vmem:[#allocation2] sm:$0xff]
    %v56 = vld [vmem:[#allocation2 + $0x8] sm:$0xff]
    %v57 = vld [vmem:[#allocation2 + $0x10] sm:$0xff]
    %v58 = vld [vmem:[#allocation2 + $0x18] sm:$0xff]
    %v59 = vld [vmem:[#allocation2 + $0x20] sm:$0xff]
    %v60 = vld [vmem:[#allocation2 + $0x28] sm:$0xff]
    %v61 = vld [vmem:[#allocation2 + $0x30] sm:$0xff]
    %v62 = vld [vmem:[#allocation2 + $0x38] sm:$0xff]
    %v63 = vld [vmem:[#allocation2 + $0x40] sm:$0xff]
    %v64 = vld [vmem:[#allocation2 + $0x48] sm:$0xff]
    %v65 = vld [vmem:[#allocation2 + $0x50] sm:$0xff]
    %v66 = vld [vmem:[#allocation2 + $0x58] sm:$0xff]
    %v67 = vld [vmem:[#allocation2 + $0x60] sm:$0xff]
    %v68 = vld [vmem:[#allocation2 + $0x68] sm:$0xff]
    %v69 = vld [vmem:[#allocation2 + $0x70] sm:$0xff]
    %v70 = vld [vmem:[#allocation2 + $0x78] sm:$0xff]
    %v71 = vld [vmem:[#allocation2 + $0x80] sm:$0xff]
    %v72 = vld [vmem:[#allocation2 + $0x88] sm:$0xff]
    %v73 = vld [vmem:[#allocation2 + $0x90] sm:$0xff]
    %v74 = vld [vmem:[#allocation2 + $0x98] sm:$0xff]
    %v75 = vlaneseq
    %v76 = vand.u32 %v75, 127
    %v77 = vadd.s32 %v76, 128
    %vm78 = vcmp.lt.s32.totalorder %v76, 0
    %v79 = vsub.s32 0, %v76
    %v80 = vsel %vm78, %v79, %v76
    %v81 = vshrl.u32 %v80, 7
    %v82 = vand.u32 %v80, 127
    %v83 = vsub.s32 0, %v82
    %v84 = vsel %vm78, %v83, %v82
    %vm85 = vcmp.lt.s32.totalorder %v77, 0
    %v86 = vsub.s32 0, %v77
    %v87 = vsel %vm85, %v86, %v77
    %v88 = vshrl.u32 %v87, 7
    %v89 = vand.u32 %v87, 127
    %v90 = vsub.s32 0, %v89
    %v91 = vsel %vm85, %v90, %v89
    %vm92 = vcmp.ne.s32.totalorder %v84, 0
    %vm93 = vcmp.ne.s32.totalorder %v91, 0
    %vm94 = vcmp.lt.s32.totalorder %v84, 0
    %vm95 = vcmp.lt.s32.totalorder %v91, 0
    %vm96 = vmand %vm94, %vm92
    %vm97 = vmand %vm95, %vm93
    %v98 = vadd.s32 %v84, 128
    %v99 = vadd.s32 %v91, 128
    %v100 = vsel %vm96, %v98, %v84
    %v101 = vsel %vm97, %v99, %v91
    %vm102 = vcmp.ge.s32.totalorder %v100, 2
    %vm103 = vcmp.ge.s32.totalorder %v101, 2
    %vm104 = vcmp.ge.s32.totalorder %v100, 1
    %vm105 = vcmp.ge.s32.totalorder %v101, 1
    %vm106 = vcmp.lt.s32.totalorder %v100, 127
    %vm107 = vcmp.lt.s32.totalorder %v101, 127
    %vm108 = vcmp.lt.s32.totalorder %v100, 126
    %vm109 = vcmp.lt.s32.totalorder %v101, 126
    %v110 = vld [vmem:[#allocation5] sm:$0xff]
    %v111 = vld [vmem:[#allocation5 + $0x8] sm:$0xff]
    %v112 = vld [vmem:[#allocation5 + $0x10] sm:$0xff]
    %v113 = vld [vmem:[#allocation5 + $0x18] sm:$0xff]
    %v114 = vld [vmem:[#allocation5 + $0x20] sm:$0xff]
    %v115 = vld [vmem:[#allocation5 + $0x28] sm:$0xff]
    %v116 = vld [vmem:[#allocation5 + $0x30] sm:$0xff]
    %v117 = vld [vmem:[#allocation5 + $0x38] sm:$0xff]
    %v118 = vld [vmem:[#allocation5 + $0x40] sm:$0xff]
    %v119 = vld [vmem:[#allocation5 + $0x48] sm:$0xff]
    %v120 = vld [vmem:[#allocation5 + $0x50] sm:$0xff]
    %v121 = vld [vmem:[#allocation5 + $0x58] sm:$0xff]
    %v122 = vld [vmem:[#allocation5 + $0x60] sm:$0xff]
    %v123 = vld [vmem:[#allocation5 + $0x68] sm:$0xff]
    %v124 = vld [vmem:[#allocation5 + $0x70] sm:$0xff]
    %v125 = vld [vmem:[#allocation5 + $0x78] sm:$0xff]
    %126 = vrot.lane.b32.xlu0 %v55, 2
    %v127 = vpop.permute.xlu0 %126
    %128 = vrot.lane.b32.xlu0 %v57, 2
    %v129 = vpop.permute.xlu0 %128
    %130 = vrot.lane.b32.xlu0 %v59, 2
    %v131 = vpop.permute.xlu0 %130
    %132 = vrot.lane.b32.xlu0 %v61, 2
    %v133 = vpop.permute.xlu0 %132
    %134 = vrot.lane.b32.xlu0 %v63, 2
    %v135 = vpop.permute.xlu0 %134
    %136 = vrot.lane.b32.xlu0 %v65, 2
    %v137 = vpop.permute.xlu0 %136
    %138 = vrot.lane.b32.xlu0 %v67, 2
    %v139 = vpop.permute.xlu0 %138
    %140 = vrot.lane.b32.xlu0 %v69, 2
    %v141 = vpop.permute.xlu0 %140
    %142 = vrot.lane.b32.xlu0 %v71, 2
    %v143 = vpop.permute.xlu0 %142
    %144 = vrot.lane.b32.xlu0 %v73, 2
    %v145 = vpop.permute.xlu0 %144
    %146 = vrot.lane.b32.xlu0 %v56, 2
    %v147 = vpop.permute.xlu0 %146
    %148 = vrot.lane.b32.xlu0 %v58, 2
    %v149 = vpop.permute.xlu0 %148
    %150 = vrot.lane.b32.xlu0 %v60, 2
    %v151 = vpop.permute.xlu0 %150
    %152 = vrot.lane.b32.xlu0 %v62, 2
    %v153 = vpop.permute.xlu0 %152
    %154 = vrot.lane.b32.xlu0 %v64, 2
    %v155 = vpop.permute.xlu0 %154
    %156 = vrot.lane.b32.xlu0 %v66, 2
    %v157 = vpop.permute.xlu0 %156
    %158 = vrot.lane.b32.xlu0 %v68, 2
    %v159 = vpop.permute.xlu0 %158
    %160 = vrot.lane.b32.xlu0 %v70, 2
    %v161 = vpop.permute.xlu0 %160
    %162 = vrot.lane.b32.xlu0 %v72, 2
    %v163 = vpop.permute.xlu0 %162
    %164 = vrot.lane.b32.xlu0 %v74, 2
    %v165 = vpop.permute.xlu0 %164
    %vm166 = vcmp.lt.s32.totalorder %v76, 2
    %v167 = vsel %vm166, %v127, %v147
    %v168 = vsel %vm166, %v129, %v149
    %v169 = vsel %vm166, %v131, %v151
    %v170 = vsel %vm166, %v133, %v153
    %v171 = vsel %vm166, %v135, %v155
    %v172 = vsel %vm166, %v137, %v157
    %v173 = vsel %vm166, %v139, %v159
    %v174 = vsel %vm166, %v141, %v161
    %v175 = vsel %vm166, %v143, %v163
    %v176 = vsel %vm166, %v145, %v165
    %v177 = vsel %vm166, %v147, %v127
    %v178 = vsel %vm166, %v149, %v129
    %v179 = vsel %vm166, %v151, %v131
    %v180 = vsel %vm166, %v153, %v133
    %v181 = vsel %vm166, %v155, %v135
    %v182 = vsel %vm166, %v157, %v137
    %v183 = vsel %vm166, %v159, %v139
    %v184 = vsel %vm166, %v161, %v141
    %v185 = vsel %vm166, %v163, %v143
    %v186 = vsel %vm166, %v165, %v145
    %v187 = vsel %vm102, 1, 0
    %v188 = vsel %vm103, 1, 0
    %vm189 = vcmp.eq.s32.totalorder %v187, 1
    %vm190 = vcmp.eq.s32.totalorder %v188, 1
    %v191 = vsel %vm189, %v177, 0.0
    %v192 = vsel %vm190, %v167, 0.0
    %v193 = vsel %vm189, %v178, 0.0
    %v194 = vsel %vm190, %v168, 0.0
    %v195 = vsel %vm189, %v179, 0.0
    %v196 = vsel %vm190, %v169, 0.0
    %v197 = vsel %vm189, %v180, 0.0
    %v198 = vsel %vm190, %v170, 0.0
    %v199 = vsel %vm189, %v181, 0.0
    %v200 = vsel %vm190, %v171, 0.0
    %v201 = vsel %vm189, %v182, 0.0
    %v202 = vsel %vm190, %v172, 0.0
    %v203 = vsel %vm189, %v183, 0.0
    %v204 = vsel %vm190, %v173, 0.0
    %v205 = vsel %vm189, %v184, 0.0
    %v206 = vsel %vm190, %v174, 0.0
    %v207 = vsel %vm189, %v185, 0.0
    %v208 = vsel %vm190, %v175, 0.0
    %v209 = vsel %vm189, %v186, 0.0
    %v210 = vsel %vm190, %v176, 0.0
    %211 = vrot.lane.b32.xlu0 %v55, 1
    %v212 = vpop.permute.xlu0 %211
    %213 = vrot.lane.b32.xlu0 %v57, 1
    %v214 = vpop.permute.xlu0 %213
    %215 = vrot.lane.b32.xlu0 %v59, 1
    %v216 = vpop.permute.xlu0 %215
    %217 = vrot.lane.b32.xlu0 %v61, 1
    %v218 = vpop.permute.xlu0 %217
    %219 = vrot.lane.b32.xlu0 %v63, 1
    %v220 = vpop.permute.xlu0 %219
    %221 = vrot.lane.b32.xlu0 %v65, 1
    %v222 = vpop.permute.xlu0 %221
    %223 = vrot.lane.b32.xlu0 %v67, 1
    %v224 = vpop.permute.xlu0 %223
    %225 = vrot.lane.b32.xlu0 %v69, 1
    %v226 = vpop.permute.xlu0 %225
    %227 = vrot.lane.b32.xlu0 %v71, 1
    %v228 = vpop.permute.xlu0 %227
    %229 = vrot.lane.b32.xlu0 %v73, 1
    %v230 = vpop.permute.xlu0 %229
    %231 = vrot.lane.b32.xlu0 %v56, 1
    %v232 = vpop.permute.xlu0 %231
    %233 = vrot.lane.b32.xlu0 %v58, 1
    %v234 = vpop.permute.xlu0 %233
    %235 = vrot.lane.b32.xlu0 %v60, 1
    %v236 = vpop.permute.xlu0 %235
    %237 = vrot.lane.b32.xlu0 %v62, 1
    %v238 = vpop.permute.xlu0 %237
    %239 = vrot.lane.b32.xlu0 %v64, 1
    %v240 = vpop.permute.xlu0 %239
    %241 = vrot.lane.b32.xlu0 %v66, 1
    %v242 = vpop.permute.xlu0 %241
    %243 = vrot.lane.b32.xlu0 %v68, 1
    %v244 = vpop.permute.xlu0 %243
    %245 = vrot.lane.b32.xlu0 %v70, 1
    %v246 = vpop.permute.xlu0 %245
    %247 = vrot.lane.b32.xlu0 %v72, 1
    %v248 = vpop.permute.xlu0 %247
    %249 = vrot.lane.b32.xlu0 %v74, 1
    %v250 = vpop.permute.xlu0 %249
    %vm251 = vcmp.lt.s32.totalorder %v76, 1
    %v252 = vsel %vm251, %v212, %v232
    %v253 = vsel %vm251, %v214, %v234
    %v254 = vsel %vm251, %v216, %v236
    %v255 = vsel %vm251, %v218, %v238
    %v256 = vsel %vm251, %v220, %v240
    %v257 = vsel %vm251, %v222, %v242
    %v258 = vsel %vm251, %v224, %v244
    %v259 = vsel %vm251, %v226, %v246
    %v260 = vsel %vm251, %v228, %v248
    %v261 = vsel %vm251, %v230, %v250
    %v262 = vsel %vm251, %v232, %v212
    %v263 = vsel %vm251, %v234, %v214
    %v264 = vsel %vm251, %v236, %v216
    %v265 = vsel %vm251, %v238, %v218
    %v266 = vsel %vm251, %v240, %v220
    %v267 = vsel %vm251, %v242, %v222
    %v268 = vsel %vm251, %v244, %v224
    %v269 = vsel %vm251, %v246, %v226
    %v270 = vsel %vm251, %v248, %v228
    %v271 = vsel %vm251, %v250, %v230
    %v272 = vsel %vm104, 1, 0
    %v273 = vsel %vm105, 1, 0
    %vm274 = vcmp.eq.s32.totalorder %v272, 1
    %vm275 = vcmp.eq.s32.totalorder %v273, 1
    %v276 = vsel %vm274, %v262, 0.0
    %v277 = vsel %vm275, %v252, 0.0
    %v278 = vsel %vm274, %v263, 0.0
    %v279 = vsel %vm275, %v253, 0.0
    %v280 = vsel %vm274, %v264, 0.0
    %v281 = vsel %vm275, %v254, 0.0
    %v282 = vsel %vm274, %v265, 0.0
    %v283 = vsel %vm275, %v255, 0.0
    %v284 = vsel %vm274, %v266, 0.0
    %v285 = vsel %vm275, %v256, 0.0
    %v286 = vsel %vm274, %v267, 0.0
    %v287 = vsel %vm275, %v257, 0.0
    %v288 = vsel %vm274, %v268, 0.0
    %v289 = vsel %vm275, %v258, 0.0
    %v290 = vsel %vm274, %v269, 0.0
    %v291 = vsel %vm275, %v259, 0.0
    %v292 = vsel %vm274, %v270, 0.0
    %v293 = vsel %vm275, %v260, 0.0
    %v294 = vsel %vm274, %v271, 0.0
    %v295 = vsel %vm275, %v261, 0.0
    %296 = vrot.lane.b32.xlu0 %v55, 127
    %v297 = vpop.permute.xlu0 %296
    %298 = vrot.lane.b32.xlu0 %v57, 127
    %v299 = vpop.permute.xlu0 %298
    %300 = vrot.lane.b32.xlu0 %v59, 127
    %v301 = vpop.permute.xlu0 %300
    %302 = vrot.lane.b32.xlu0 %v61, 127
    %v303 = vpop.permute.xlu0 %302
    %304 = vrot.lane.b32.xlu0 %v63, 127
    %v305 = vpop.permute.xlu0 %304
    %306 = vrot.lane.b32.xlu0 %v65, 127
    %v307 = vpop.permute.xlu0 %306
    %308 = vrot.lane.b32.xlu0 %v67, 127
    %v309 = vpop.permute.xlu0 %308
    %310 = vrot.lane.b32.xlu0 %v69, 127
    %v311 = vpop.permute.xlu0 %310
    %312 = vrot.lane.b32.xlu0 %v71, 127
    %v313 = vpop.permute.xlu0 %312
    %314 = vrot.lane.b32.xlu0 %v73, 127
    %v315 = vpop.permute.xlu0 %314
    %316 = vrot.lane.b32.xlu0 %v56, 127
    %v317 = vpop.permute.xlu0 %316
    %318 = vrot.lane.b32.xlu0 %v58, 127
    %v319 = vpop.permute.xlu0 %318
    %320 = vrot.lane.b32.xlu0 %v60, 127
    %v321 = vpop.permute.xlu0 %320
    %322 = vrot.lane.b32.xlu0 %v62, 127
    %v323 = vpop.permute.xlu0 %322
    %324 = vrot.lane.b32.xlu0 %v64, 127
    %v325 = vpop.permute.xlu0 %324
    %326 = vrot.lane.b32.xlu0 %v66, 127
    %v327 = vpop.permute.xlu0 %326
    %328 = vrot.lane.b32.xlu0 %v68, 127
    %v329 = vpop.permute.xlu0 %328
    %330 = vrot.lane.b32.xlu0 %v70, 127
    %v331 = vpop.permute.xlu0 %330
    %332 = vrot.lane.b32.xlu0 %v72, 127
    %v333 = vpop.permute.xlu0 %332
    %334 = vrot.lane.b32.xlu0 %v74, 127
    %v335 = vpop.permute.xlu0 %334
    %vm336 = vcmp.lt.s32.totalorder %v76, 127
    %v337 = vsel %vm336, %v297, %v317
    %v338 = vsel %vm336, %v299, %v319
    %v339 = vsel %vm336, %v301, %v321
    %v340 = vsel %vm336, %v303, %v323
    %v341 = vsel %vm336, %v305, %v325
    %v342 = vsel %vm336, %v307, %v327
    %v343 = vsel %vm336, %v309, %v329
    %v344 = vsel %vm336, %v311, %v331
    %v345 = vsel %vm336, %v313, %v333
    %v346 = vsel %vm336, %v315, %v335
    %v347 = vsel %vm336, %v317, %v297
    %v348 = vsel %vm336, %v319, %v299
    %v349 = vsel %vm336, %v321, %v301
    %v350 = vsel %vm336, %v323, %v303
    %v351 = vsel %vm336, %v325, %v305
    %v352 = vsel %vm336, %v327, %v307
    %v353 = vsel %vm336, %v329, %v309
    %v354 = vsel %vm336, %v331, %v311
    %v355 = vsel %vm336, %v333, %v313
    %v356 = vsel %vm336, %v335, %v315
    %v357 = vsel %vm106, 1, 0
    %v358 = vsel %vm107, 1, 0
    %vm359 = vcmp.eq.s32.totalorder %v357, 1
    %vm360 = vcmp.eq.s32.totalorder %v358, 1
    %v361 = vsel %vm359, %v337, 0.0
    %v362 = vsel %vm360, %v347, 0.0
    %v363 = vsel %vm359, %v338, 0.0
    %v364 = vsel %vm360, %v348, 0.0
    %v365 = vsel %vm359, %v339, 0.0
    %v366 = vsel %vm360, %v349, 0.0
    %v367 = vsel %vm359, %v340, 0.0
    %v368 = vsel %vm360, %v350, 0.0
    %v369 = vsel %vm359, %v341, 0.0
    %v370 = vsel %vm360, %v351, 0.0
    %v371 = vsel %vm359, %v342, 0.0
    %v372 = vsel %vm360, %v352, 0.0
    %v373 = vsel %vm359, %v343, 0.0
    %v374 = vsel %vm360, %v353, 0.0
    %v375 = vsel %vm359, %v344, 0.0
    %v376 = vsel %vm360, %v354, 0.0
    %v377 = vsel %vm359, %v345, 0.0
    %v378 = vsel %vm360, %v355, 0.0
    %v379 = vsel %vm359, %v346, 0.0
    %v380 = vsel %vm360, %v356, 0.0
    %381 = vrot.lane.b32.xlu0 %v55, 126
    %v382 = vpop.permute.xlu0 %381
    %383 = vrot.lane.b32.xlu0 %v57, 126
    %v384 = vpop.permute.xlu0 %383
    %385 = vrot.lane.b32.xlu0 %v59, 126
    %v386 = vpop.permute.xlu0 %385
    %387 = vrot.lane.b32.xlu0 %v61, 126
    %v388 = vpop.permute.xlu0 %387
    %389 = vrot.lane.b32.xlu0 %v63, 126
    %v390 = vpop.permute.xlu0 %389
    %391 = vrot.lane.b32.xlu0 %v65, 126
    %v392 = vpop.permute.xlu0 %391
    %393 = vrot.lane.b32.xlu0 %v67, 126
    %v394 = vpop.permute.xlu0 %393
    %395 = vrot.lane.b32.xlu0 %v69, 126
    %v396 = vpop.permute.xlu0 %395
    %397 = vrot.lane.b32.xlu0 %v71, 126
    %v398 = vpop.permute.xlu0 %397
    %399 = vrot.lane.b32.xlu0 %v73, 126
    %v400 = vpop.permute.xlu0 %399
    %401 = vrot.lane.b32.xlu0 %v56, 126
    %v402 = vpop.permute.xlu0 %401
    %403 = vrot.lane.b32.xlu0 %v58, 126
    %v404 = vpop.permute.xlu0 %403
    %405 = vrot.lane.b32.xlu0 %v60, 126
    %v406 = vpop.permute.xlu0 %405
    %407 = vrot.lane.b32.xlu0 %v62, 126
    %v408 = vpop.permute.xlu0 %407
    %409 = vrot.lane.b32.xlu0 %v64, 126
    %v410 = vpop.permute.xlu0 %409
    %411 = vrot.lane.b32.xlu0 %v66, 126
    %v412 = vpop.permute.xlu0 %411
    %413 = vrot.lane.b32.xlu0 %v68, 126
    %v414 = vpop.permute.xlu0 %413
    %415 = vrot.lane.b32.xlu0 %v70, 126
    %v416 = vpop.permute.xlu0 %415
    %417 = vrot.lane.b32.xlu0 %v72, 126
    %v418 = vpop.permute.xlu0 %417
    %419 = vrot.lane.b32.xlu0 %v74, 126
    %v420 = vpop.permute.xlu0 %419
    %vm421 = vcmp.lt.s32.totalorder %v76, 126
    %v422 = vsel %vm421, %v382, %v402
    %v423 = vsel %vm421, %v384, %v404
    %v424 = vsel %vm421, %v386, %v406
    %v425 = vsel %vm421, %v388, %v408
    %v426 = vsel %vm421, %v390, %v410
    %v427 = vsel %vm421, %v392, %v412
    %v428 = vsel %vm421, %v394, %v414
    %v429 = vsel %vm421, %v396, %v416
    %v430 = vsel %vm421, %v398, %v418
    %v431 = vsel %vm421, %v400, %v420
    %v432 = vsel %vm421, %v402, %v382
    %v433 = vsel %vm421, %v404, %v384
    %v434 = vsel %vm421, %v406, %v386
    %v435 = vsel %vm421, %v408, %v388
    %v436 = vsel %vm421, %v410, %v390
    %v437 = vsel %vm421, %v412, %v392
    %v438 = vsel %vm421, %v414, %v394
    %v439 = vsel %vm421, %v416, %v396
    %v440 = vsel %vm421, %v418, %v398
    %v441 = vsel %vm421, %v420, %v400
    %v442 = vsel %vm108, 1, 0
    %v443 = vsel %vm109, 1, 0
    %vm444 = vcmp.eq.s32.totalorder %v442, 1
    %vm445 = vcmp.eq.s32.totalorder %v443, 1
    %v446 = vsel %vm444, %v422, 0.0
    %v447 = vsel %vm445, %v432, 0.0
    %v448 = vsel %vm444, %v423, 0.0
    %v449 = vsel %vm445, %v433, 0.0
    %v450 = vsel %vm444, %v424, 0.0
    %v451 = vsel %vm445, %v434, 0.0
    %v452 = vsel %vm444, %v425, 0.0
    %v453 = vsel %vm445, %v435, 0.0
    %v454 = vsel %vm444, %v426, 0.0
    %v455 = vsel %vm445, %v436, 0.0
    %v456 = vsel %vm444, %v427, 0.0
    %v457 = vsel %vm445, %v437, 0.0
    %v458 = vsel %vm444, %v428, 0.0
    %v459 = vsel %vm445, %v438, 0.0
    %v460 = vsel %vm444, %v429, 0.0
    %v461 = vsel %vm445, %v439, 0.0
    %v462 = vsel %vm444, %v430, 0.0
    %v463 = vsel %vm445, %v440, 0.0
    %v464 = vsel %vm444, %v431, 0.0
    %v465 = vsel %vm445, %v441, 0.0
    %v466 = vld [vmem:[%s2] sm:$0xff]
    %v467 = vld [vmem:[%s2 + $0x8] sm:$0xff]
    %v468 = vld [vmem:[%s2 + $0x10] sm:$0xff]
    %v469 = vld [vmem:[%s2 + $0x18] sm:$0xff]
    %471 = vset.pattern.permute.xlu0 0
    %472 = vperm.xlu0 %471, %v466
    %v473 = vpop.permute.xlu0 %472
    %476 = vset.pattern.permute.xlu0 0
    %477 = vperm.xlu0 %476, %v467
    %v478 = vpop.permute.xlu0 %477
    %481 = vset.pattern.permute.xlu0 0
    %482 = vperm.xlu0 %481, %v468
    %v483 = vpop.permute.xlu0 %482
    %486 = vset.pattern.permute.xlu0 0
    %487 = vperm.xlu0 %486, %v469
    %v488 = vpop.permute.xlu0 %487
    %vm490 = vcmask 130048
    %v492 = vsel %vm490, %v113, 0
    %v495 = vsel %vm490, %v117, 0
    %v498 = vsel %vm490, %v121, 0
    %v501 = vsel %vm490, %v125, 0
    %503 = vmatprep.subr.mxu0 %v287
    %504 = vmatpush1.msra.mxu0 %v286
    %505 = vmatprep.subr.mxu0 %v285
    %506 = vmatpush1.msra.mxu0 %v284
    %507 = vmatprep.subr.mxu0 %v283
    %508 = vmatpush1.msra.mxu0 %v282
    %509 = vmatprep.subr.mxu0 %v281
    %510 = vmatpush1.msra.mxu0 %v280
    %511 = vmatprep.subr.mxu0 %v279
    %512 = vmatpush1.msra.mxu0 %v278
    %513 = vmatprep.subr.mxu0 %v277
    %514 = vmatpush1.msra.mxu0 %v276
    %515 = vmatprep.subr.mxu0 %v210
    %516 = vmatpush1.msra.mxu0 %v209
    %517 = vmatprep.subr.mxu0 %v208
    %518 = vmatpush1.msra.mxu0 %v207
    %519 = vmatprep.subr.mxu0 %v206
    %520 = vmatpush1.msra.mxu0 %v205
    %521 = vmatprep.subr.mxu0 %v204
    %522 = vmatpush1.msra.mxu0 %v203
    %523 = vmatprep.subr.mxu0 %v202
    %524 = vmatpush1.msra.mxu0 %v201
    %525 = vmatprep.subr.mxu0 %v200
    %526 = vmatpush1.msra.mxu0 %v199
    %527 = vmatprep.subr.mxu0 %v198
    %528 = vmatpush1.msra.mxu0 %v197
    %529 = vmatprep.subr.mxu0 %v196
    %530 = vmatpush1.msra.mxu0 %v195
    %531 = vmatprep.subr.mxu0 %v194
    %532 = vmatpush1.msra.mxu0 %v193
    %533 = vmatprep.subr.mxu0 %v192
    %534 = vmatpush1.msra.mxu0 %v191
    %535 = vmatprep.subr.mxu0 %v364
    %536 = vmatpush2.msra.mxu0 %v363
    %537 = vmatprep.subr.mxu0 %v362
    %538 = vmatpush2.msra.mxu0 %v361
    %539 = vmatprep.subr.mxu0 %v74
    %540 = vmatpush2.msra.mxu0 %v73
    %541 = vmatprep.subr.mxu0 %v72
    %542 = vmatpush2.msra.mxu0 %v71
    %543 = vmatprep.subr.mxu0 %v70
    %544 = vmatpush2.msra.mxu0 %v69
    %545 = vmatprep.subr.mxu0 %v68
    %546 = vmatpush2.msra.mxu0 %v67
    %547 = vmatprep.subr.mxu0 %v66
    %548 = vmatpush2.msra.mxu0 %v65
    %549 = vmatprep.subr.mxu0 %v64
    %550 = vmatpush2.msra.mxu0 %v63
    %551 = vmatprep.subr.mxu0 %v62
    %552 = vmatpush2.msra.mxu0 %v61
    %553 = vmatprep.subr.mxu0 %v60
    %554 = vmatpush2.msra.mxu0 %v59
    %555 = vmatprep.subr.mxu0 %v58
    %556 = vmatpush2.msra.mxu0 %v57
    %557 = vmatprep.subr.mxu0 %v56
    %558 = vmatpush2.msra.mxu0 %v55
    %559 = vmatprep.subr.mxu0 %v295
    %560 = vmatpush2.msra.mxu0 %v294
    %561 = vmatprep.subr.mxu0 %v293
    %562 = vmatpush2.msra.mxu0 %v292
    %563 = vmatprep.subr.mxu0 %v291
    %564 = vmatpush2.msra.mxu0 %v290
    %565 = vmatprep.subr.mxu0 %v289
    %566 = vmatpush2.msra.mxu0 %v288
    %567 = vmatprep.mubr.f32.mxu0 %v111
    %568 = vmatmul.mubr.f32.gmra.mxu0 %v110
    %v569 = vpop.f32.mrf.mxu0
    %v570 = vadd.f32 %v473, %v569
    %v571 = vpop.f32.mrf.mxu0
    %v572 = vadd.f32 %v473, %v571
    %573 = vmatprep.mubr.f32.mxu0 %v115
    %574 = vmatmul.mubr.f32.gmra.mxu0 %v114
    %v575 = vpop.f32.mrf.mxu0
    %v576 = vadd.f32 %v478, %v575
    %v577 = vpop.f32.mrf.mxu0
    %v578 = vadd.f32 %v478, %v577
    %579 = vmatprep.mubr.f32.mxu0 %v119
    %580 = vmatmul.mubr.f32.gmra.mxu0 %v118
    %v581 = vpop.f32.mrf.mxu0
    %v582 = vadd.f32 %v483, %v581
    %v583 = vpop.f32.mrf.mxu0
    %v584 = vadd.f32 %v483, %v583
    %585 = vmatprep.mubr.f32.mxu0 %v123
    %586 = vmatmul.mubr.f32.gmra.mxu0 %v122
    %v587 = vpop.f32.mrf.mxu0
    %v588 = vadd.f32 %v488, %v587
    %v589 = vpop.f32.mrf.mxu0
    %v590 = vadd.f32 %v488, %v589
    %591 = vdwg.mxu0
    %592 = vmatprep.subr.mxu0 %v461
    %593 = vmatpush1.msra.mxu0 %v460
    %594 = vmatprep.subr.mxu0 %v459
    %595 = vmatpush1.msra.mxu0 %v458
    %596 = vmatprep.subr.mxu0 %v457
    %597 = vmatpush1.msra.mxu0 %v456
    %598 = vmatprep.subr.mxu0 %v455
    %599 = vmatpush1.msra.mxu0 %v454
    %600 = vmatprep.subr.mxu0 %v453
    %601 = vmatpush1.msra.mxu0 %v452
    %602 = vmatprep.subr.mxu0 %v451
    %603 = vmatpush1.msra.mxu0 %v450
    %604 = vmatprep.subr.mxu0 %v449
    %605 = vmatpush1.msra.mxu0 %v448
    %606 = vmatprep.subr.mxu0 %v447
    %607 = vmatpush1.msra.mxu0 %v446
    %608 = vmatprep.subr.mxu0 %v380
    %609 = vmatpush1.msra.mxu0 %v379
    %610 = vmatprep.subr.mxu0 %v378
    %611 = vmatpush1.msra.mxu0 %v377
    %612 = vmatprep.subr.mxu0 %v376
    %613 = vmatpush1.msra.mxu0 %v375
    %614 = vmatprep.subr.mxu0 %v374
    %615 = vmatpush1.msra.mxu0 %v373
    %616 = vmatprep.subr.mxu0 %v372
    %617 = vmatpush1.msra.mxu0 %v371
    %618 = vmatprep.subr.mxu0 %v370
    %619 = vmatpush1.msra.mxu0 %v369
    %620 = vmatprep.subr.mxu0 %v368
    %621 = vmatpush1.msra.mxu0 %v367
    %622 = vmatprep.subr.mxu0 %v366
    %623 = vmatpush1.msra.mxu0 %v365
    %624 = vmatprep.subr.mxu0 0.0
    %625 = vmatpush2.msra.mxu0 0.0
    %626 = vmatprep.subr.mxu0 0.0
    %627 = vmatpush2.msra.mxu0 0.0
    %628 = vmatprep.subr.mxu0 0.0
    %629 = vmatpush2.msra.mxu0 0.0
    %630 = vmatprep.subr.mxu0 0.0
    %631 = vmatpush2.msra.mxu0 0.0
    %632 = vmatprep.subr.mxu0 0.0
    %633 = vmatpush2.msra.mxu0 0.0
    %634 = vmatprep.subr.mxu0 0.0
    %635 = vmatpush2.msra.mxu0 0.0
    %636 = vmatprep.subr.mxu0 0.0
    %637 = vmatpush2.msra.mxu0 0.0
    %638 = vmatprep.subr.mxu0 0.0
    %639 = vmatpush2.msra.mxu0 0.0
    %640 = vmatprep.subr.mxu0 0.0
    %641 = vmatpush2.msra.mxu0 0.0
    %642 = vmatprep.subr.mxu0 0.0
    %643 = vmatpush2.msra.mxu0 0.0
    %644 = vmatprep.subr.mxu0 0.0
    %645 = vmatpush2.msra.mxu0 0.0
    %646 = vmatprep.subr.mxu0 0.0
    %647 = vmatpush2.msra.mxu0 0.0
    %648 = vmatprep.subr.mxu0 0.0
    %649 = vmatpush2.msra.mxu0 0.0
    %650 = vmatprep.subr.mxu0 0.0
    %651 = vmatpush2.msra.mxu0 0.0
    %652 = vmatprep.subr.mxu0 %v465
    %653 = vmatpush2.msra.mxu0 %v464
    %654 = vmatprep.subr.mxu0 %v463
    %655 = vmatpush2.msra.mxu0 %v462
    %656 = vmatprep.mubr.f32.mxu0 %v492
    %657 = vmatmul.mubr.f32.gmra.mxu0 %v112
    %v658 = vpop.f32.mrf.mxu0
    %v659 = vadd.f32 %v570, %v658
    %v660 = vpop.f32.mrf.mxu0
    %v661 = vadd.f32 %v572, %v660
    %662 = vmatprep.mubr.f32.mxu0 %v495
    %663 = vmatmul.mubr.f32.gmra.mxu0 %v116
    %v664 = vpop.f32.mrf.mxu0
    %v665 = vadd.f32 %v576, %v664
    %v666 = vpop.f32.mrf.mxu0
    %v667 = vadd.f32 %v578, %v666
    %668 = vmatprep.mubr.f32.mxu0 %v498
    %669 = vmatmul.mubr.f32.gmra.mxu0 %v120
    %v670 = vpop.f32.mrf.mxu0
    %v671 = vadd.f32 %v582, %v670
    %v672 = vpop.f32.mrf.mxu0
    %v673 = vadd.f32 %v584, %v672
    %674 = vmatprep.mubr.f32.mxu0 %v501
    %675 = vmatmul.mubr.f32.gmra.mxu0 %v124
    %v676 = vpop.f32.mrf.mxu0
    %v677 = vadd.f32 %v588, %v676
    %v678 = vpop.f32.mrf.mxu0
    %v679 = vadd.f32 %v590, %v678
    %680 = vdwg.mxu0
    %v681 = vmax.f32 %v659, 0.0
    %v682 = vmax.f32 %v661, 0.0
    %v683 = vmax.f32 %v665, 0.0
    %v684 = vmax.f32 %v667, 0.0
    %v685 = vmax.f32 %v671, 0.0
    %v686 = vmax.f32 %v673, 0.0
    %v687 = vmax.f32 %v677, 0.0
    %v688 = vmax.f32 %v679, 0.0
    %v689 = vld [vmem:[%s3] sm:$0xff]
    %v690 = vld [vmem:[%s3 + $0x8] sm:$0xff]
    %v691 = vld [vmem:[%s3 + $0x10] sm:$0xff]
    %v692 = vld [vmem:[%s3 + $0x18] sm:$0xff]
    %693 = vrot.lane.b32.xlu0 %v681, 2
    %v694 = vpop.permute.xlu0 %693
    %695 = vrot.lane.b32.xlu0 %v683, 2
    %v696 = vpop.permute.xlu0 %695
    %697 = vrot.lane.b32.xlu0 %v685, 2
    %v698 = vpop.permute.xlu0 %697
    %699 = vrot.lane.b32.xlu0 %v687, 2
    %v700 = vpop.permute.xlu0 %699
    %701 = vrot.lane.b32.xlu0 %v682, 2
    %v702 = vpop.permute.xlu0 %701
    %703 = vrot.lane.b32.xlu0 %v684, 2
    %v704 = vpop.permute.xlu0 %703
    %705 = vrot.lane.b32.xlu0 %v686, 2
    %v706 = vpop.permute.xlu0 %705
    %707 = vrot.lane.b32.xlu0 %v688, 2
    %v708 = vpop.permute.xlu0 %707
    %v709 = vsel %vm166, %v694, %v702
    %v710 = vsel %vm166, %v696, %v704
    %v711 = vsel %vm166, %v698, %v706
    %v712 = vsel %vm166, %v700, %v708
    %v713 = vsel %vm166, %v702, %v694
    %v714 = vsel %vm166, %v704, %v696
    %v715 = vsel %vm166, %v706, %v698
    %v716 = vsel %vm166, %v708, %v700
    %v717 = vsel %vm189, %v713, 0.0
    %v718 = vsel %vm190, %v709, 0.0
    %v719 = vsel %vm189, %v714, 0.0
    %v720 = vsel %vm190, %v710, 0.0
    %v721 = vsel %vm189, %v715, 0.0
    %v722 = vsel %vm190, %v711, 0.0
    %v723 = vsel %vm189, %v716, 0.0
    %v724 = vsel %vm190, %v712, 0.0
    %725 = vrot.lane.b32.xlu0 %v681, 1
    %v726 = vpop.permute.xlu0 %725
    %727 = vrot.lane.b32.xlu0 %v683, 1
    %v728 = vpop.permute.xlu0 %727
    %729 = vrot.lane.b32.xlu0 %v685, 1
    %v730 = vpop.permute.xlu0 %729
    %731 = vrot.lane.b32.xlu0 %v687, 1
    %v732 = vpop.permute.xlu0 %731
    %733 = vrot.lane.b32.xlu0 %v682, 1
    %v734 = vpop.permute.xlu0 %733
    %735 = vrot.lane.b32.xlu0 %v684, 1
    %v736 = vpop.permute.xlu0 %735
    %737 = vrot.lane.b32.xlu0 %v686, 1
    %v738 = vpop.permute.xlu0 %737
    %739 = vrot.lane.b32.xlu0 %v688, 1
    %v740 = vpop.permute.xlu0 %739
    %v741 = vsel %vm251, %v726, %v734
    %v742 = vsel %vm251, %v728, %v736
    %v743 = vsel %vm251, %v730, %v738
    %v744 = vsel %vm251, %v732, %v740
    %v745 = vsel %vm251, %v734, %v726
    %v746 = vsel %vm251, %v736, %v728
    %v747 = vsel %vm251, %v738, %v730
    %v748 = vsel %vm251, %v740, %v732
    %v749 = vsel %vm274, %v745, 0.0
    %v750 = vsel %vm275, %v741, 0.0
    %v751 = vsel %vm274, %v746, 0.0
    %v752 = vsel %vm275, %v742, 0.0
    %v753 = vsel %vm274, %v747, 0.0
    %v754 = vsel %vm275, %v743, 0.0
    %v755 = vsel %vm274, %v748, 0.0
    %v756 = vsel %vm275, %v744, 0.0
    %757 = vrot.lane.b32.xlu0 %v681, 127
    %v758 = vpop.permute.xlu0 %757
    %759 = vrot.lane.b32.xlu0 %v683, 127
    %v760 = vpop.permute.xlu0 %759
    %761 = vrot.lane.b32.xlu0 %v685, 127
    %v762 = vpop.permute.xlu0 %761
    %763 = vrot.lane.b32.xlu0 %v687, 127
    %v764 = vpop.permute.xlu0 %763
    %765 = vrot.lane.b32.xlu0 %v682, 127
    %v766 = vpop.permute.xlu0 %765
    %767 = vrot.lane.b32.xlu0 %v684, 127
    %v768 = vpop.permute.xlu0 %767
    %769 = vrot.lane.b32.xlu0 %v686, 127
    %v770 = vpop.permute.xlu0 %769
    %771 = vrot.lane.b32.xlu0 %v688, 127
    %v772 = vpop.permute.xlu0 %771
    %v773 = vsel %vm336, %v758, %v766
    %v774 = vsel %vm336, %v760, %v768
    %v775 = vsel %vm336, %v762, %v770
    %v776 = vsel %vm336, %v764, %v772
    %v777 = vsel %vm336, %v766, %v758
    %v778 = vsel %vm336, %v768, %v760
    %v779 = vsel %vm336, %v770, %v762
    %v780 = vsel %vm336, %v772, %v764
    %v781 = vsel %vm359, %v773, 0.0
    %v782 = vsel %vm360, %v777, 0.0
    %v783 = vsel %vm359, %v774, 0.0
    %v784 = vsel %vm360, %v778, 0.0
    %v785 = vsel %vm359, %v775, 0.0
    %v786 = vsel %vm360, %v779, 0.0
    %v787 = vsel %vm359, %v776, 0.0
    %v788 = vsel %vm360, %v780, 0.0
    %789 = vrot.lane.b32.xlu0 %v681, 126
    %v790 = vpop.permute.xlu0 %789
    %791 = vrot.lane.b32.xlu0 %v683, 126
    %v792 = vpop.permute.xlu0 %791
    %793 = vrot.lane.b32.xlu0 %v685, 126
    %v794 = vpop.permute.xlu0 %793
    %795 = vrot.lane.b32.xlu0 %v687, 126
    %v796 = vpop.permute.xlu0 %795
    %797 = vrot.lane.b32.xlu0 %v682, 126
    %v798 = vpop.permute.xlu0 %797
    %799 = vrot.lane.b32.xlu0 %v684, 126
    %v800 = vpop.permute.xlu0 %799
    %801 = vrot.lane.b32.xlu0 %v686, 126
    %v802 = vpop.permute.xlu0 %801
    %803 = vrot.lane.b32.xlu0 %v688, 126
    %v804 = vpop.permute.xlu0 %803
    %v805 = vsel %vm421, %v790, %v798
    %v806 = vsel %vm421, %v792, %v800
    %v807 = vsel %vm421, %v794, %v802
    %v808 = vsel %vm421, %v796, %v804
    %v809 = vsel %vm421, %v798, %v790
    %v810 = vsel %vm421, %v800, %v792
    %v811 = vsel %vm421, %v802, %v794
    %v812 = vsel %vm421, %v804, %v796
    %v813 = vsel %vm444, %v805, 0.0
    %v814 = vsel %vm445, %v809, 0.0
    %v815 = vsel %vm444, %v806, 0.0
    %v816 = vsel %vm445, %v810, 0.0
    %v817 = vsel %vm444, %v807, 0.0
    %v818 = vsel %vm445, %v811, 0.0
    %v819 = vsel %vm444, %v808, 0.0
    %v820 = vsel %vm445, %v812, 0.0
    %v821 = vld [vmem:[%s4] sm:$0xff]
    %v822 = vld [vmem:[%s4 + $0x8] sm:$0xff]
    %824 = vset.pattern.permute.xlu0 0
    %825 = vperm.xlu0 %824, %v821
    %v826 = vpop.permute.xlu0 %825
    %829 = vset.pattern.permute.xlu0 0
    %830 = vperm.xlu0 %829, %v822
    %v831 = vpop.permute.xlu0 %830
    %vm833 = vcmask 261120
    %v835 = vsel %vm833, %v690, 0
    %v838 = vsel %vm833, %v692, 0
    %840 = vmatprep.subr.mxu0 %v788
    %841 = vmatpush1.msra.mxu0 %v787
    %842 = vmatprep.subr.mxu0 %v786
    %843 = vmatpush1.msra.mxu0 %v785
    %844 = vmatprep.subr.mxu0 %v784
    %845 = vmatpush1.msra.mxu0 %v783
    %846 = vmatprep.subr.mxu0 %v782
    %847 = vmatpush1.msra.mxu0 %v781
    %848 = vmatprep.subr.mxu0 %v688
    %849 = vmatpush1.msra.mxu0 %v687
    %850 = vmatprep.subr.mxu0 %v686
    %851 = vmatpush1.msra.mxu0 %v685
    %852 = vmatprep.subr.mxu0 %v684
    %853 = vmatpush1.msra.mxu0 %v683
    %854 = vmatprep.subr.mxu0 %v682
    %855 = vmatpush1.msra.mxu0 %v681
    %856 = vmatprep.subr.mxu0 %v756
    %857 = vmatpush1.msra.mxu0 %v755
    %858 = vmatprep.subr.mxu0 %v754
    %859 = vmatpush1.msra.mxu0 %v753
    %860 = vmatprep.subr.mxu0 %v752
    %861 = vmatpush1.msra.mxu0 %v751
    %862 = vmatprep.subr.mxu0 %v750
    %863 = vmatpush1.msra.mxu0 %v749
    %864 = vmatprep.subr.mxu0 %v724
    %865 = vmatpush1.msra.mxu0 %v723
    %866 = vmatprep.subr.mxu0 %v722
    %867 = vmatpush1.msra.mxu0 %v721
    %868 = vmatprep.subr.mxu0 %v720
    %869 = vmatpush1.msra.mxu0 %v719
    %870 = vmatprep.subr.mxu0 %v718
    %871 = vmatpush1.msra.mxu0 %v717
    %872 = vmatprep.subr.mxu0 0.0
    %873 = vmatpush2.msra.mxu0 0.0
    %874 = vmatprep.subr.mxu0 0.0
    %875 = vmatpush2.msra.mxu0 0.0
    %876 = vmatprep.subr.mxu0 0.0
    %877 = vmatpush2.msra.mxu0 0.0
    %878 = vmatprep.subr.mxu0 0.0
    %879 = vmatpush2.msra.mxu0 0.0
    %880 = vmatprep.subr.mxu0 0.0
    %881 = vmatpush2.msra.mxu0 0.0
    %882 = vmatprep.subr.mxu0 0.0
    %883 = vmatpush2.msra.mxu0 0.0
    %884 = vmatprep.subr.mxu0 0.0
    %885 = vmatpush2.msra.mxu0 0.0
    %886 = vmatprep.subr.mxu0 0.0
    %887 = vmatpush2.msra.mxu0 0.0
    %888 = vmatprep.subr.mxu0 0.0
    %889 = vmatpush2.msra.mxu0 0.0
    %890 = vmatprep.subr.mxu0 0.0
    %891 = vmatpush2.msra.mxu0 0.0
    %892 = vmatprep.subr.mxu0 0.0
    %893 = vmatpush2.msra.mxu0 0.0
    %894 = vmatprep.subr.mxu0 0.0
    %895 = vmatpush2.msra.mxu0 0.0
    %896 = vmatprep.subr.mxu0 %v820
    %897 = vmatpush2.msra.mxu0 %v819
    %898 = vmatprep.subr.mxu0 %v818
    %899 = vmatpush2.msra.mxu0 %v817
    %900 = vmatprep.subr.mxu0 %v816
    %901 = vmatpush2.msra.mxu0 %v815
    %902 = vmatprep.subr.mxu0 %v814
    %903 = vmatpush2.msra.mxu0 %v813
    %904 = vmatprep.mubr.f32.mxu0 %v835
    %905 = vmatmul.mubr.f32.gmra.mxu0 %v689
    %v906 = vpop.f32.mrf.mxu0
    %v907 = vadd.f32 %v826, %v906
    %v908 = vpop.f32.mrf.mxu0
    %v909 = vadd.f32 %v826, %v908
    %910 = vmatprep.mubr.f32.mxu0 %v838
    %911 = vmatmul.mubr.f32.gmra.mxu0 %v691
    %v912 = vpop.f32.mrf.mxu0
    %v913 = vadd.f32 %v831, %v912
    %v914 = vpop.f32.mrf.mxu0
    %v915 = vadd.f32 %v831, %v914
    %916 = vdwg.mxu0
    %v917 = vmax.f32 %v907, 0.0
    %v918 = vmax.f32 %v909, 0.0
    %v919 = vmax.f32 %v913, 0.0
    %v920 = vmax.f32 %v915, 0.0
    %v921 = vld [vmem:[%s5] sm:$0x7]
    %922 = vrot.lane.b32.xlu0 %v917, 2
    %v923 = vpop.permute.xlu0 %922
    %924 = vrot.lane.b32.xlu0 %v919, 2
    %v925 = vpop.permute.xlu0 %924
    %926 = vrot.lane.b32.xlu0 %v918, 2
    %v927 = vpop.permute.xlu0 %926
    %928 = vrot.lane.b32.xlu0 %v920, 2
    %v929 = vpop.permute.xlu0 %928
    %v930 = vsel %vm166, %v923, %v927
    %v931 = vsel %vm166, %v925, %v929
    %v932 = vsel %vm166, %v927, %v923
    %v933 = vsel %vm166, %v929, %v925
    %v934 = vsel %vm189, %v932, 0.0
    %v935 = vsel %vm190, %v930, 0.0
    %v936 = vsel %vm189, %v933, 0.0
    %v937 = vsel %vm190, %v931, 0.0
    %938 = vrot.lane.b32.xlu0 %v917, 1
    %v939 = vpop.permute.xlu0 %938
    %940 = vrot.lane.b32.xlu0 %v919, 1
    %v941 = vpop.permute.xlu0 %940
    %942 = vrot.lane.b32.xlu0 %v918, 1
    %v943 = vpop.permute.xlu0 %942
    %944 = vrot.lane.b32.xlu0 %v920, 1
    %v945 = vpop.permute.xlu0 %944
    %v946 = vsel %vm251, %v939, %v943
    %v947 = vsel %vm251, %v941, %v945
    %v948 = vsel %vm251, %v943, %v939
    %v949 = vsel %vm251, %v945, %v941
    %v950 = vsel %vm274, %v948, 0.0
    %v951 = vsel %vm275, %v946, 0.0
    %v952 = vsel %vm274, %v949, 0.0
    %v953 = vsel %vm275, %v947, 0.0
    %954 = vrot.lane.b32.xlu0 %v917, 127
    %v955 = vpop.permute.xlu0 %954
    %956 = vrot.lane.b32.xlu0 %v919, 127
    %v957 = vpop.permute.xlu0 %956
    %958 = vrot.lane.b32.xlu0 %v918, 127
    %v959 = vpop.permute.xlu0 %958
    %960 = vrot.lane.b32.xlu0 %v920, 127
    %v961 = vpop.permute.xlu0 %960
    %v962 = vsel %vm336, %v955, %v959
    %v963 = vsel %vm336, %v957, %v961
    %v964 = vsel %vm336, %v959, %v955
    %v965 = vsel %vm336, %v961, %v957
    %v966 = vsel %vm359, %v962, 0.0
    %v967 = vsel %vm360, %v964, 0.0
    %v968 = vsel %vm359, %v963, 0.0
    %v969 = vsel %vm360, %v965, 0.0
    %970 = vrot.lane.b32.xlu0 %v917, 126
    %v971 = vpop.permute.xlu0 %970
    %972 = vrot.lane.b32.xlu0 %v919, 126
    %v973 = vpop.permute.xlu0 %972
    %974 = vrot.lane.b32.xlu0 %v918, 126
    %v975 = vpop.permute.xlu0 %974
    %976 = vrot.lane.b32.xlu0 %v920, 126
    %v977 = vpop.permute.xlu0 %976
    %v978 = vsel %vm421, %v971, %v975
    %v979 = vsel %vm421, %v973, %v977
    %v980 = vsel %vm421, %v975, %v971
    %v981 = vsel %vm421, %v977, %v973
    %v982 = vsel %vm444, %v978, 0.0
    %v983 = vsel %vm445, %v980, 0.0
    %v984 = vsel %vm444, %v979, 0.0
    %v985 = vsel %vm445, %v981, 0.0
    %v986 = vld [vmem:[%s6] sm:$0x7]
    %988 = vset.pattern.permute.xlu0 0
    %989 = vperm.xlu0 %988, %v986
    %v990 = vpop.permute.xlu0 %989
    %vm992 = vcmask 654336
    %v994 = vsel %vm992, %v921, 0
    %996 = vmatprep.subr.mxu0 0.0
    %997 = vmatpush1.msra.mxu0 0.0
    %998 = vmatprep.subr.mxu0 0.0
    %999 = vmatpush1.msra.mxu0 0.0
    %1000 = vmatprep.subr.mxu0 0.0
    %1001 = vmatpush1.msra.mxu0 0.0
    %1002 = vmatprep.subr.mxu0 0.0
    %1003 = vmatpush1.msra.mxu0 0.0
    %1004 = vmatprep.subr.mxu0 0.0
    %1005 = vmatpush1.msra.mxu0 0.0
    %1006 = vmatprep.subr.mxu0 0.0
    %1007 = vmatpush1.msra.mxu0 0.0
    %1008 = vmatprep.subr.mxu0 %v985
    %1009 = vmatpush1.msra.mxu0 %v984
    %1010 = vmatprep.subr.mxu0 %v983
    %1011 = vmatpush1.msra.mxu0 %v982
    %1012 = vmatprep.subr.mxu0 %v969
    %1013 = vmatpush1.msra.mxu0 %v968
    %1014 = vmatprep.subr.mxu0 %v967
    %1015 = vmatpush1.msra.mxu0 %v966
    %1016 = vmatprep.subr.mxu0 %v920
    %1017 = vmatpush1.msra.mxu0 %v919
    %1018 = vmatprep.subr.mxu0 %v918
    %1019 = vmatpush1.msra.mxu0 %v917
    %1020 = vmatprep.subr.mxu0 %v953
    %1021 = vmatpush1.msra.mxu0 %v952
    %1022 = vmatprep.subr.mxu0 %v951
    %1023 = vmatpush1.msra.mxu0 %v950
    %1024 = vmatprep.subr.mxu0 %v937
    %1025 = vmatpush1.msra.mxu0 %v936
    %1026 = vmatprep.subr.mxu0 %v935
    %1027 = vmatpush1.msra.mxu0 %v934
    %1028 = vmatprep.subr.mxu0 0.0
    %1029 = vmatpush2.msra.mxu0 0.0
    %1030 = vmatprep.subr.mxu0 0.0
    %1031 = vmatpush2.msra.mxu0 0.0
    %1032 = vmatprep.subr.mxu0 0.0
    %1033 = vmatpush2.msra.mxu0 0.0
    %1034 = vmatprep.subr.mxu0 0.0
    %1035 = vmatpush2.msra.mxu0 0.0
    %1036 = vmatprep.subr.mxu0 0.0
    %1037 = vmatpush2.msra.mxu0 0.0
    %1038 = vmatprep.subr.mxu0 0.0
    %1039 = vmatpush2.msra.mxu0 0.0
    %1040 = vmatprep.subr.mxu0 0.0
    %1041 = vmatpush2.msra.mxu0 0.0
    %1042 = vmatprep.subr.mxu0 0.0
    %1043 = vmatpush2.msra.mxu0 0.0
    %1044 = vmatprep.subr.mxu0 0.0
    %1045 = vmatpush2.msra.mxu0 0.0
    %1046 = vmatprep.subr.mxu0 0.0
    %1047 = vmatpush2.msra.mxu0 0.0
    %1048 = vmatprep.subr.mxu0 0.0
    %1049 = vmatpush2.msra.mxu0 0.0
    %1050 = vmatprep.subr.mxu0 0.0
    %1051 = vmatpush2.msra.mxu0 0.0
    %1052 = vmatprep.subr.mxu0 0.0
    %1053 = vmatpush2.msra.mxu0 0.0
    %1054 = vmatprep.subr.mxu0 0.0
    %1055 = vmatpush2.msra.mxu0 0.0
    %1056 = vmatprep.subr.mxu0 0.0
    %1057 = vmatpush2.msra.mxu0 0.0
    %1058 = vmatprep.subr.mxu0 0.0
    %1059 = vmatpush2.msra.mxu0 0.0
    %1060 = vmatprep.mubr.f32.mxu0 0.0
    %1061 = vmatmul.mubr.f32.gmra.mxu0 %v994
    %v1062 = vpop.f32.mrf.mxu0
    %v1063 = vadd.f32 %v990, %v1062
    %v1064 = vpop.f32.mrf.mxu0
    %v1065 = vadd.f32 %v990, %v1064
    %1066 = vdwg.mxu0
    %v1067 = vmax.f32 %v1063, 0.0
    %v1068 = vmax.f32 %v1065, 0.0
    %v1071 = vcombine.low %v1067, %v1068
    %1073 = vst [vmem:[#allocation7] sm:$0x77] %v1071
    // Predicated region
    $region38: #{tpu_custom_call.1} parent=1 // pred_check
      _
    $region39: #{tpu_custom_call.1} parent=1 // pred_check_branch
      %1075 = sbr.rel (0) target = $region41
    $region40: #{tpu_custom_call.1} parent=1 // pred_region
      %s1077 = ssub.s32 128, 128
      %1078 = vsyncadd [#allocation4], %s1077
      %s1080 = sshll.u32 [#allocation7], 4
      %s1081 = int_to_ptr.vmem [resolvable:$true] %s1080
      %1083 = dma.vmem_to_hbm [thread:$0]  %s1081, 128, %s7, [#allocation4]
    $region41: #{tpu_custom_call.1} parent=1 // pred_fallthru
      _
    // Predicated region
    $region42: #{tpu_custom_call.1} parent=1 // pred_check
      _
    $region43: #{tpu_custom_call.1} parent=1 // pred_check_branch
      %1085 = sbr.rel (0) target = $region45
    $region44: #{tpu_custom_call.1} parent=1 // pred_region
      %1086 = dma.done [#allocation4], 128
    $region45: #{tpu_custom_call.1} parent=1 // pred_fallthru
      _
    %1087 = vsyncpa [#allocation3], 1
    %1088 = vsyncpa [#allocation6], 1
    %1089 = vsyncpa [#allocation4], 1

</llo_original>
